<compile_context>
chip_gen: v5e
topology: v5e:2x2
jax: 0.10.0
libtpu: 0.0.40
codegen_flags: <defaults>
</compile_context>

<pallas_src>
import functools
import math

import jax
import jax.numpy as jnp
from jax.experimental import pallas as pl
from jax.experimental.pallas import tpu as pltpu


def gt_layer_kernel(
    h_ref, eattr_ref, src_oh_ref, dst_oh_ref, dst_oh_t_ref,
    wqkv_ref, p_ref, wo_ref, wf1_ref, wf2_ref, vec_ref,
    out_ref, *, D,
):
    f32 = jnp.float32
    bf16 = jnp.bfloat16

    h = h_ref[...]                                   # [N, in_dim] f32
    vec = vec_ref[...]                               # [7, 2D] f32 (packed row vectors)
    bo, g1, b1 = vec[0:1, :D], vec[1:2, :D], vec[2:3, :D]
    bf1 = vec[3:4, :]                                # [1, 2D]
    bf2, g2, b2 = vec[4:5, :D], vec[5:6, :D], vec[6:7, :D]

    # ---- fused K|V|Q projection: one MXU matmul (bf16 operands, f32 accumulate) ----
    qkv = jnp.dot(h.astype(bf16), wqkv_ref[...], preferred_element_type=f32)   # [N, 3D]

    # ---- gather node features to edges via one-hot matmuls (MXU) -------------------
    kv_src = jnp.dot(src_oh_ref[...], qkv[:, :2 * D].astype(bf16),             # [E, 2D]
                     preferred_element_type=f32)
    q_dst = jnp.dot(dst_oh_ref[...], qkv[:, 2 * D:].astype(bf16),              # [E, D]
                    preferred_element_type=f32)
    k_src = kv_src[:, :D]
    v_src = kv_src[:, D:]

    # ---- fused per-edge per-head attention score ------------------------------------
    # P already contains we * 1/sqrt(d_head) and the per-head sum + broadcast-back.
    kq = k_src * q_dst                                                          # [E, D] f32
    hs = jnp.dot(kq.astype(bf16), p_ref[...], preferred_element_type=f32)       # [E, D]
    s_bc = jnp.exp(jnp.clip(eattr_ref[...] * hs, -5.0, 5.0))                    # [E, D]

    # ---- merged scatter-add: one [N,E]@[E,2D] gives wV | Z in a lane-dense tile -----
    msg_z = jnp.concatenate([v_src * s_bc, s_bc], axis=1)                       # [E, 2D]
    wz = jnp.dot(dst_oh_t_ref[...], msg_z.astype(bf16),                         # [N, 2D]
                 preferred_element_type=f32)
    h_attn = wz[:, :D] * pl.reciprocal(wz[:, D:] + 1e-6, approx=True)           # [N, D]

    # ---- O projection + residual + BatchNorm1d (train-mode batch stats) -------------
    # dropout(p=0.0) is a no-op.
    h1 = h + jnp.dot(h_attn.astype(bf16), wo_ref[...], preferred_element_type=f32) + bo
    mu1 = jnp.mean(h1, axis=0, keepdims=True)
    c1 = h1 - mu1
    var1 = jnp.mean(c1 * c1, axis=0, keepdims=True)
    h1 = c1 * (g1 * jax.lax.rsqrt(var1 + 1e-5)) + b1

    # ---- FFN + residual + BatchNorm1d -------------------------------------------------
    f = jnp.dot(h1.astype(bf16), wf1_ref[...], preferred_element_type=f32) + bf1
    f = jnp.maximum(f, 0.0)
    f = jnp.dot(f.astype(bf16), wf2_ref[...], preferred_element_type=f32) + bf2
    h2 = h1 + f
    mu2 = jnp.mean(h2, axis=0, keepdims=True)
    c2 = h2 - mu2
    var2 = jnp.mean(c2 * c2, axis=0, keepdims=True)
    out_ref[...] = c2 * (g2 * jax.lax.rsqrt(var2 + 1e-5)) + b2


def gt_layer(h, edge_index, edge_attr, params, num_heads):
    """Full GTLayer forward: one fused pallas_call, every intermediate in VMEM."""
    N, in_dim = h.shape
    D = params["wo"].shape[0]
    assert in_dim == D, "residual connection requires in_dim == out_dim"
    E = edge_attr.shape[0]
    d_head = D // num_heads
    inv_sqrt_d = 1.0 / math.sqrt(d_head)

    f32, bf16 = jnp.float32, jnp.bfloat16

    # Layout plumbing in the wrapper (free): bf16 one-hot gather/scatter matrices
    # (0/1 are exact in bf16), fused [K|V|Q] weight, block-diag head matrix, packed biases.
    src_oh = jax.nn.one_hot(edge_index[0], N, dtype=bf16)          # [E, N]
    dst_oh = jax.nn.one_hot(edge_index[1], N, dtype=bf16)          # [E, N]
    dst_oh_t = dst_oh.T                                            # [N, E]

    wqkv = jnp.concatenate([params["wk"], params["wv"], params["wq"]],
                           axis=1).astype(bf16)                    # [in_dim, 3D]

    cols = jnp.arange(D)
    head_mask = (cols[:, None] // d_head) == (cols[None, :] // d_head)     # [D, D]
    p_mat = (head_mask.astype(f32) * params["we"].reshape(D, 1)
             * inv_sqrt_d).astype(bf16)                            # [D, D]

    def pad_row(v):
        v = v.reshape(-1)
        return jnp.pad(v, (0, 2 * D - v.shape[0])).reshape(1, 2 * D)

    vec_pack = jnp.concatenate([
        pad_row(params["bo"]), pad_row(params["gamma1"]), pad_row(params["beta1"]),
        pad_row(params["bf1"]),
        pad_row(params["bf2"]), pad_row(params["gamma2"]), pad_row(params["beta2"]),
    ], axis=0).astype(f32)                                         # [7, 2D]

    args = (
        h.astype(f32), edge_attr.astype(f32), src_oh, dst_oh, dst_oh_t,
        wqkv, p_mat, params["wo"].astype(bf16),
        params["wf1"].astype(bf16), params["wf2"].astype(bf16), vec_pack,
    )

    def full_spec(a):
        nd = a.ndim
        return pl.BlockSpec(a.shape, lambda *_: (0,) * nd)

    flops = 2 * (N * in_dim * 3 * D      # QKV projection
                 + E * N * 2 * D         # K/V gather
                 + E * N * D             # Q gather
                 + E * D * D             # head-score matmul
                 + N * E * 2 * D         # merged scatter
                 + N * D * D             # O projection
                 + N * D * 2 * D         # FFN1
                 + N * 2 * D * D)        # FFN2
    bytes_accessed = sum(int(a.size) * a.dtype.itemsize for a in args) + N * D * 4

    kernel = functools.partial(gt_layer_kernel, D=D)
    return pl.pallas_call(
        kernel,
        out_shape=jax.ShapeDtypeStruct((N, D), f32),
        in_specs=[full_spec(a) for a in args],
        out_specs=pl.BlockSpec((N, D), lambda *_: (0, 0)),
        compiler_params=pltpu.CompilerParams(vmem_limit_bytes=32 * 1024 * 1024),
        cost_estimate=pl.CostEstimate(flops=flops, transcendentals=E * D,
                                      bytes_accessed=bytes_accessed),
    )(*args)


# ----------------------------- plain-JAX reference --------------------------------
def _batchnorm_train(x, gamma, beta, eps=1e-5):
    mu = jnp.mean(x, axis=0, keepdims=True)
    var = jnp.mean((x - mu) ** 2, axis=0, keepdims=True)
    return (x - mu) / jnp.sqrt(var + eps) * gamma + beta


def gt_layer_ref(h, edge_index, edge_attr, p, num_heads):
    N = h.shape[0]
    D = p["wo"].shape[0]
    d = D // num_heads
    src, dst = edge_index[0], edge_index[1]
    q = (h @ p["wq"]).reshape(N, num_heads, d)
    k = (h @ p["wk"]).reshape(N, num_heads, d)
    v = (h @ p["wv"]).reshape(N, num_heads, d)
    e = (edge_attr @ p["we"]).reshape(-1, num_heads, d)
    score = (k[src] * q[dst]) / math.sqrt(d) * e
    score = jnp.exp(jnp.clip(jnp.sum(score, axis=-1, keepdims=True), -5.0, 5.0))   # [E,H,1]
    msg = v[src] * score
    wV = jnp.zeros((N, num_heads, d), jnp.float32).at[dst].add(msg)
    Z = jnp.zeros((N, num_heads, 1), jnp.float32).at[dst].add(score)
    h_attn = (wV / (Z + 1e-6)).reshape(N, D)
    h1 = h + (h_attn @ p["wo"] + p["bo"])
    h1 = _batchnorm_train(h1, p["gamma1"], p["beta1"])
    f = jnp.maximum(h1 @ p["wf1"] + p["bf1"], 0.0)
    f = f @ p["wf2"] + p["bf2"]
    h2 = h1 + f
    return _batchnorm_train(h2, p["gamma2"], p["beta2"])


if __name__ == "__main__":
    # Small shapes consistent with the module: 32 'region' nodes, hidden 64, 4 heads, 128 edges.
    N, in_dim, out_dim, num_heads, E = 32, 64, 64, 4, 128

    key = jax.random.PRNGKey(0)
    ks = jax.random.split(key, 11)
    h = jax.random.normal(ks[0], (N, in_dim), jnp.float32)
    src = jax.random.randint(ks[1], (E,), 0, N)
    dst = jax.random.randint(ks[2], (E,), 0, N)
    edge_index = jnp.stack([src, dst], axis=0)
    edge_attr = jax.random.normal(ks[3], (E, 1), jnp.float32)

    def linear_init(k, fan_in, fan_out, bias=True):
        kw, kb = jax.random.split(k)
        bound = 1.0 / math.sqrt(fan_in)
        w = jax.random.uniform(kw, (fan_in, fan_out), jnp.float32, -bound, bound)
        b = (jax.random.uniform(kb, (fan_out,), jnp.float32, -bound, bound)
             if bias else jnp.zeros((fan_out,), jnp.float32))
        return w, b

    wq, _ = linear_init(ks[4], in_dim, out_dim, bias=False)   # use_bias=False in GTLayer
    wk, _ = linear_init(ks[5], in_dim, out_dim, bias=False)
    wv, _ = linear_init(ks[6], in_dim, out_dim, bias=False)
    we, _ = linear_init(ks[7], 1, out_dim, bias=False)        # edge Linear(1, out_dim)
    wo, bo = linear_init(ks[8], out_dim, out_dim)
    wf1, bf1 = linear_init(ks[9], out_dim, 2 * out_dim)
    wf2, bf2 = linear_init(ks[10], 2 * out_dim, out_dim)

    params = dict(
        wq=wq, wk=wk, wv=wv, we=we, wo=wo, bo=bo,
        wf1=wf1, bf1=bf1, wf2=wf2, bf2=bf2,
        gamma1=jnp.ones((out_dim,), jnp.float32), beta1=jnp.zeros((out_dim,), jnp.float32),
        gamma2=jnp.ones((out_dim,), jnp.float32), beta2=jnp.zeros((out_dim,), jnp.float32),
    )

    out = gt_layer(h, edge_index, edge_attr, params, num_heads)
    out = jax.block_until_ready(out)

    ref = gt_layer_ref(h, edge_index, edge_attr, params, num_heads)
    assert out.shape == (N, out_dim)
    assert jnp.allclose(out, ref, atol=3e-2, rtol=3e-2), (
        "mismatch vs reference, max abs diff = "
        f"{float(jnp.max(jnp.abs(out - ref)))}"
    )
    print("KERNEL_OK")
</pallas_src>

<mosaic_0001>
module attributes {stable_mosaic.version = 11 : i64} {
  func.func @gt_layer_kernel(%arg0: memref<32x64xf32, #tpu.memory_space<vmem>>, %arg1: memref<128x1xf32, #tpu.memory_space<vmem>>, %arg2: memref<128x32xbf16, #tpu.memory_space<vmem>>, %arg3: memref<128x32xbf16, #tpu.memory_space<vmem>>, %arg4: memref<32x128xbf16, #tpu.memory_space<vmem>>, %arg5: memref<64x192xbf16, #tpu.memory_space<vmem>>, %arg6: memref<64x64xbf16, #tpu.memory_space<vmem>>, %arg7: memref<64x64xbf16, #tpu.memory_space<vmem>>, %arg8: memref<64x128xbf16, #tpu.memory_space<vmem>>, %arg9: memref<128x64xbf16, #tpu.memory_space<vmem>>, %arg10: memref<7x128xf32, #tpu.memory_space<vmem>>, %arg11: memref<32x64xf32, #tpu.memory_space<vmem>>) attributes {dimension_semantics = [], scalar_prefetch = 0 : i64, scratch_operands = 0 : i64, tpu.core_type = #tpu.core_type<tc>} {
    %c0 = arith.constant 0 : index
    %c0_0 = arith.constant 0 : index
    %0 = vector.load %arg0[%c0, %c0_0] : memref<32x64xf32, #tpu.memory_space<vmem>>, vector<32x64xf32>
    %c0_1 = arith.constant 0 : index
    %c0_2 = arith.constant 0 : index
    %1 = vector.load %arg10[%c0_1, %c0_2] : memref<7x128xf32, #tpu.memory_space<vmem>>, vector<7x128xf32>
    %2 = vector.extract_strided_slice %1 {offsets = [0, 0], sizes = [1, 64], strides = [1, 1]} : vector<7x128xf32> to vector<1x64xf32>
    %3 = vector.extract_strided_slice %1 {offsets = [1, 0], sizes = [1, 64], strides = [1, 1]} : vector<7x128xf32> to vector<1x64xf32>
    %4 = vector.extract_strided_slice %1 {offsets = [2, 0], sizes = [1, 64], strides = [1, 1]} : vector<7x128xf32> to vector<1x64xf32>
    %5 = vector.extract_strided_slice %1 {offsets = [3, 0], sizes = [1, 128], strides = [1, 1]} : vector<7x128xf32> to vector<1x128xf32>
    %6 = vector.extract_strided_slice %1 {offsets = [4, 0], sizes = [1, 64], strides = [1, 1]} : vector<7x128xf32> to vector<1x64xf32>
    %7 = vector.extract_strided_slice %1 {offsets = [5, 0], sizes = [1, 64], strides = [1, 1]} : vector<7x128xf32> to vector<1x64xf32>
    %8 = vector.extract_strided_slice %1 {offsets = [6, 0], sizes = [1, 64], strides = [1, 1]} : vector<7x128xf32> to vector<1x64xf32>
    %9 = arith.truncf %0 : vector<32x64xf32> to vector<32x64xbf16>
    %c0_3 = arith.constant 0 : index
    %c0_4 = arith.constant 0 : index
    %10 = vector.load %arg5[%c0_3, %c0_4] : memref<64x192xbf16, #tpu.memory_space<vmem>>, vector<64x192xbf16>
    %cst = arith.constant dense<0.000000e+00> : vector<32x192xf32>
    %11 = tpu.matmul %9, %10, %cst {dimension_numbers = #tpu.dot_dimension_numbers<[1], [0], [0], [1], [0, 0, 1, 1], [], []>} : vector<32x64xbf16>, vector<64x192xbf16>, vector<32x192xf32> -> vector<32x192xf32>
    %c0_5 = arith.constant 0 : index
    %c0_6 = arith.constant 0 : index
    %12 = vector.load %arg2[%c0_5, %c0_6] : memref<128x32xbf16, #tpu.memory_space<vmem>>, vector<128x32xbf16>
    %13 = vector.extract_strided_slice %11 {offsets = [0, 0], sizes = [32, 128], strides = [1, 1]} : vector<32x192xf32> to vector<32x128xf32>
    %14 = arith.truncf %13 : vector<32x128xf32> to vector<32x128xbf16>
    %cst_7 = arith.constant dense<0.000000e+00> : vector<128x128xf32>
    %15 = tpu.matmul %12, %14, %cst_7 {dimension_numbers = #tpu.dot_dimension_numbers<[1], [0], [0], [1], [0, 0, 1, 1], [], []>} : vector<128x32xbf16>, vector<32x128xbf16>, vector<128x128xf32> -> vector<128x128xf32>
    %c0_8 = arith.constant 0 : index
    %c0_9 = arith.constant 0 : index
    %16 = vector.load %arg3[%c0_8, %c0_9] : memref<128x32xbf16, #tpu.memory_space<vmem>>, vector<128x32xbf16>
    %17 = vector.extract_strided_slice %11 {offsets = [0, 128], sizes = [32, 64], strides = [1, 1]} : vector<32x192xf32> to vector<32x64xf32>
    %18 = arith.truncf %17 : vector<32x64xf32> to vector<32x64xbf16>
    %cst_10 = arith.constant dense<0.000000e+00> : vector<128x64xf32>
    %19 = tpu.matmul %16, %18, %cst_10 {dimension_numbers = #tpu.dot_dimension_numbers<[1], [0], [0], [1], [0, 0, 1, 1], [], []>} : vector<128x32xbf16>, vector<32x64xbf16>, vector<128x64xf32> -> vector<128x64xf32>
    %20 = vector.extract_strided_slice %15 {offsets = [0, 0], sizes = [128, 64], strides = [1, 1]} : vector<128x128xf32> to vector<128x64xf32>
    %21 = vector.extract_strided_slice %15 {offsets = [0, 64], sizes = [128, 64], strides = [1, 1]} : vector<128x128xf32> to vector<128x64xf32>
    %22 = arith.mulf %20, %19 : vector<128x64xf32>
    %23 = arith.truncf %22 : vector<128x64xf32> to vector<128x64xbf16>
    %c0_11 = arith.constant 0 : index
    %c0_12 = arith.constant 0 : index
    %24 = vector.load %arg6[%c0_11, %c0_12] : memref<64x64xbf16, #tpu.memory_space<vmem>>, vector<64x64xbf16>
    %cst_13 = arith.constant dense<0.000000e+00> : vector<128x64xf32>
    %25 = tpu.matmul %23, %24, %cst_13 {dimension_numbers = #tpu.dot_dimension_numbers<[1], [0], [0], [1], [0, 0, 1, 1], [], []>} : vector<128x64xbf16>, vector<64x64xbf16>, vector<128x64xf32> -> vector<128x64xf32>
    %c0_14 = arith.constant 0 : index
    %c0_15 = arith.constant 0 : index
    %26 = vector.load %arg1[%c0_14, %c0_15] : memref<128x1xf32, #tpu.memory_space<vmem>>, vector<128x1xf32>
    %27 = vector.broadcast %26 : vector<128x1xf32> to vector<128x64xf32>
    %28 = arith.mulf %27, %25 : vector<128x64xf32>
    %cst_16 = arith.constant -5.000000e+00 : f32
    %cst_17 = arith.constant 5.000000e+00 : f32
    %29 = vector.broadcast %cst_16 : f32 to vector<128x64xf32>
    %30 = arith.maximumf %29, %28 : vector<128x64xf32>
    %31 = vector.broadcast %cst_17 : f32 to vector<128x64xf32>
    %32 = arith.minimumf %31, %30 : vector<128x64xf32>
    %33 = math.exp %32 : vector<128x64xf32>
    %34 = arith.mulf %21, %33 : vector<128x64xf32>
    %35 = tpu.concatenate %34, %33 in 1 : vector<128x64xf32>, vector<128x64xf32> -> vector<128x128xf32>
    %c0_18 = arith.constant 0 : index
    %c0_19 = arith.constant 0 : index
    %36 = vector.load %arg4[%c0_18, %c0_19] : memref<32x128xbf16, #tpu.memory_space<vmem>>, vector<32x128xbf16>
    %37 = arith.truncf %35 : vector<128x128xf32> to vector<128x128xbf16>
    %cst_20 = arith.constant dense<0.000000e+00> : vector<32x128xf32>
    %38 = tpu.matmul %36, %37, %cst_20 {dimension_numbers = #tpu.dot_dimension_numbers<[1], [0], [0], [1], [0, 0, 1, 1], [], []>} : vector<32x128xbf16>, vector<128x128xbf16>, vector<32x128xf32> -> vector<32x128xf32>
    %39 = vector.extract_strided_slice %38 {offsets = [0, 0], sizes = [32, 64], strides = [1, 1]} : vector<32x128xf32> to vector<32x64xf32>
    %40 = vector.extract_strided_slice %38 {offsets = [0, 64], sizes = [32, 64], strides = [1, 1]} : vector<32x128xf32> to vector<32x64xf32>
    %cst_21 = arith.constant 9.99999997E-7 : f32
    %41 = vector.broadcast %cst_21 : f32 to vector<32x64xf32>
    %42 = arith.addf %40, %41 : vector<32x64xf32>
    %43 = tpu.reciprocal %42 {approx = true} : vector<32x64xf32> -> vector<32x64xf32>
    %44 = arith.mulf %39, %43 : vector<32x64xf32>
    %45 = arith.truncf %44 : vector<32x64xf32> to vector<32x64xbf16>
    %c0_22 = arith.constant 0 : index
    %c0_23 = arith.constant 0 : index
    %46 = vector.load %arg7[%c0_22, %c0_23] : memref<64x64xbf16, #tpu.memory_space<vmem>>, vector<64x64xbf16>
    %cst_24 = arith.constant dense<0.000000e+00> : vector<32x64xf32>
    %47 = tpu.matmul %45, %46, %cst_24 {dimension_numbers = #tpu.dot_dimension_numbers<[1], [0], [0], [1], [0, 0, 1, 1], [], []>} : vector<32x64xbf16>, vector<64x64xbf16>, vector<32x64xf32> -> vector<32x64xf32>
    %48 = arith.addf %0, %47 : vector<32x64xf32>
    %49 = vector.broadcast %2 : vector<1x64xf32> to vector<32x64xf32>
    %50 = arith.addf %48, %49 : vector<32x64xf32>
    %cst_25 = arith.constant dense<0.000000e+00> : vector<64xf32>
    %51 = vector.multi_reduction <add>, %50, %cst_25 [0] : vector<32x64xf32> to vector<64xf32>
    %52 = vector.shape_cast %51 : vector<64xf32> to vector<1x64xf32>
    %cst_26 = arith.constant 3.200000e+01 : f32
    %53 = vector.broadcast %cst_26 : f32 to vector<1x64xf32>
    %54 = arith.divf %52, %53 : vector<1x64xf32>
    %55 = vector.broadcast %54 : vector<1x64xf32> to vector<32x64xf32>
    %56 = arith.subf %50, %55 : vector<32x64xf32>
    %57 = arith.mulf %56, %56 : vector<32x64xf32>
    %cst_27 = arith.constant dense<0.000000e+00> : vector<64xf32>
    %58 = vector.multi_reduction <add>, %57, %cst_27 [0] : vector<32x64xf32> to vector<64xf32>
    %59 = vector.shape_cast %58 : vector<64xf32> to vector<1x64xf32>
    %cst_28 = arith.constant 3.200000e+01 : f32
    %60 = vector.broadcast %cst_28 : f32 to vector<1x64xf32>
    %61 = arith.divf %59, %60 : vector<1x64xf32>
    %cst_29 = arith.constant 9.99999974E-6 : f32
    %62 = vector.broadcast %cst_29 : f32 to vector<1x64xf32>
    %63 = arith.addf %61, %62 : vector<1x64xf32>
    %64 = math.rsqrt %63 : vector<1x64xf32>
    %65 = arith.mulf %3, %64 : vector<1x64xf32>
    %66 = vector.broadcast %65 : vector<1x64xf32> to vector<32x64xf32>
    %67 = arith.mulf %56, %66 : vector<32x64xf32>
    %68 = vector.broadcast %4 : vector<1x64xf32> to vector<32x64xf32>
    %69 = arith.addf %67, %68 : vector<32x64xf32>
    %70 = arith.truncf %69 : vector<32x64xf32> to vector<32x64xbf16>
    %c0_30 = arith.constant 0 : index
    %c0_31 = arith.constant 0 : index
    %71 = vector.load %arg8[%c0_30, %c0_31] : memref<64x128xbf16, #tpu.memory_space<vmem>>, vector<64x128xbf16>
    %cst_32 = arith.constant dense<0.000000e+00> : vector<32x128xf32>
    %72 = tpu.matmul %70, %71, %cst_32 {dimension_numbers = #tpu.dot_dimension_numbers<[1], [0], [0], [1], [0, 0, 1, 1], [], []>} : vector<32x64xbf16>, vector<64x128xbf16>, vector<32x128xf32> -> vector<32x128xf32>
    %73 = vector.broadcast %5 : vector<1x128xf32> to vector<32x128xf32>
    %74 = arith.addf %72, %73 : vector<32x128xf32>
    %cst_33 = arith.constant 0.000000e+00 : f32
    %75 = vector.broadcast %cst_33 : f32 to vector<32x128xf32>
    %76 = arith.maximumf %74, %75 : vector<32x128xf32>
    %77 = arith.truncf %76 : vector<32x128xf32> to vector<32x128xbf16>
    %c0_34 = arith.constant 0 : index
    %c0_35 = arith.constant 0 : index
    %78 = vector.load %arg9[%c0_34, %c0_35] : memref<128x64xbf16, #tpu.memory_space<vmem>>, vector<128x64xbf16>
    %cst_36 = arith.constant dense<0.000000e+00> : vector<32x64xf32>
    %79 = tpu.matmul %77, %78, %cst_36 {dimension_numbers = #tpu.dot_dimension_numbers<[1], [0], [0], [1], [0, 0, 1, 1], [], []>} : vector<32x128xbf16>, vector<128x64xbf16>, vector<32x64xf32> -> vector<32x64xf32>
    %80 = vector.broadcast %6 : vector<1x64xf32> to vector<32x64xf32>
    %81 = arith.addf %79, %80 : vector<32x64xf32>
    %82 = arith.addf %69, %81 : vector<32x64xf32>
    %cst_37 = arith.constant dense<0.000000e+00> : vector<64xf32>
    %83 = vector.multi_reduction <add>, %82, %cst_37 [0] : vector<32x64xf32> to vector<64xf32>
    %84 = vector.shape_cast %83 : vector<64xf32> to vector<1x64xf32>
    %cst_38 = arith.constant 3.200000e+01 : f32
    %85 = vector.broadcast %cst_38 : f32 to vector<1x64xf32>
    %86 = arith.divf %84, %85 : vector<1x64xf32>
    %87 = vector.broadcast %86 : vector<1x64xf32> to vector<32x64xf32>
    %88 = arith.subf %82, %87 : vector<32x64xf32>
    %89 = arith.mulf %88, %88 : vector<32x64xf32>
    %cst_39 = arith.constant dense<0.000000e+00> : vector<64xf32>
    %90 = vector.multi_reduction <add>, %89, %cst_39 [0] : vector<32x64xf32> to vector<64xf32>
    %91 = vector.shape_cast %90 : vector<64xf32> to vector<1x64xf32>
    %cst_40 = arith.constant 3.200000e+01 : f32
    %92 = vector.broadcast %cst_40 : f32 to vector<1x64xf32>
    %93 = arith.divf %91, %92 : vector<1x64xf32>
    %cst_41 = arith.constant 9.99999974E-6 : f32
    %94 = vector.broadcast %cst_41 : f32 to vector<1x64xf32>
    %95 = arith.addf %93, %94 : vector<1x64xf32>
    %96 = math.rsqrt %95 : vector<1x64xf32>
    %97 = arith.mulf %7, %96 : vector<1x64xf32>
    %98 = vector.broadcast %97 : vector<1x64xf32> to vector<32x64xf32>
    %99 = arith.mulf %88, %98 : vector<32x64xf32>
    %100 = vector.broadcast %8 : vector<1x64xf32> to vector<32x64xf32>
    %101 = arith.addf %99, %100 : vector<32x64xf32>
    %c0_42 = arith.constant 0 : index
    %c0_43 = arith.constant 0 : index
    %102 = vector.load %arg11[%c0_42, %c0_43] : memref<32x64xf32, #tpu.memory_space<vmem>>, vector<32x64xf32>
    tpu.vector_store %arg11[%c0_42, %c0_43], %101 {strides = array<i32>} : memref<32x64xf32, #tpu.memory_space<vmem>>, vector<32x64xf32>,
    return
  }
}

</mosaic_0001>

<llo_original>
// kernel: tpu_custom_call.1
$region0: #{tpu_custom_call.1}
  #allocation0 [shape = 'u32[]', space=smem, size = 0x4, offset = 0x4, fixed_abs, tag = 'smem constant byte address 0x4 - core index']
  #allocation1 [shape = 'u32[72,128]{1,0:T(1,128)}', space=vmem, size = 0x9000, scoped, tag = 'internal scratch']
  %s0 = inlined_call_operand.vmem [shape: f32[32,64], index: 0, kind: input, shape index: {}]
  %s1 = inlined_call_operand.vmem [shape: f32[128,1], index: 1, kind: input, shape index: {}]
  %s2 = inlined_call_operand.vmem [shape: bf16[128,32], index: 2, kind: input, shape index: {}]
  %s3 = inlined_call_operand.vmem [shape: bf16[128,32], index: 3, kind: input, shape index: {}]
  %s4 = inlined_call_operand.vmem [shape: bf16[32,128], index: 4, kind: input, shape index: {}]
  %s5 = inlined_call_operand.vmem [shape: bf16[64,192], index: 5, kind: input, shape index: {}]
  %s6 = inlined_call_operand.vmem [shape: bf16[64,64], index: 6, kind: input, shape index: {}]
  %s7 = inlined_call_operand.vmem [shape: bf16[64,64], index: 7, kind: input, shape index: {}]
  %s8 = inlined_call_operand.vmem [shape: bf16[64,128], index: 8, kind: input, shape index: {}]
  %s9 = inlined_call_operand.vmem [shape: bf16[128,64], index: 9, kind: input, shape index: {}]
  %s10 = inlined_call_operand.vmem [shape: f32[7,128], index: 10, kind: input, shape index: {}]
  %s11 = inlined_call_operand.hbm [shape: f32[32,64], index: 11, kind: output, shape index: {}]
  %s12 = sld [smem:[#allocation0]]
  $region54: #{tpu_custom_call.1} parent=0
    _
  %s14 = ssub.s32 1, %s12
  %s15 = scalar_select 0, %s14, %s12
  $region1: #{tpu_custom_call.1} parent=0
    #allocation2 [shape = 'u8[16384]{0}', space=vmem, size = 0x4000, scoped, tag = 'output window, operand 0, single buffered']
    #allocation3 [shape = 's32[1]{0}', space=sflag, size = 0x4, scoped, tag = 'scoped memory for tpu_custom_call.1']
    %16 = vsyncpa [#allocation3], 0
    // Predicated region
    $region2: #{tpu_custom_call.1} parent=1 // pred_check
      _
    $region3: #{tpu_custom_call.1} parent=1 // pred_check_branch
      %18 = sbr.rel (0) target = $region5
    $region4: #{tpu_custom_call.1} parent=1 // pred_region
      _
    $region5: #{tpu_custom_call.1} parent=1 // pred_fallthru
      _
    // Predicated region
    $region6: #{tpu_custom_call.1} parent=1 // pred_check
      _
    $region7: #{tpu_custom_call.1} parent=1 // pred_check_branch
      %20 = sbr.rel (0) target = $region9
    $region8: #{tpu_custom_call.1} parent=1 // pred_region
      _
    $region9: #{tpu_custom_call.1} parent=1 // pred_fallthru
      _
    // Predicated region
    $region10: #{tpu_custom_call.1} parent=1 // pred_check
      _
    $region11: #{tpu_custom_call.1} parent=1 // pred_check_branch
      %22 = sbr.rel (0) target = $region13
    $region12: #{tpu_custom_call.1} parent=1 // pred_region
      _
    $region13: #{tpu_custom_call.1} parent=1 // pred_fallthru
      _
    // Predicated region
    $region14: #{tpu_custom_call.1} parent=1 // pred_check
      _
    $region15: #{tpu_custom_call.1} parent=1 // pred_check_branch
      %24 = sbr.rel (0) target = $region17
    $region16: #{tpu_custom_call.1} parent=1 // pred_region
      _
    $region17: #{tpu_custom_call.1} parent=1 // pred_fallthru
      _
    // Predicated region
    $region18: #{tpu_custom_call.1} parent=1 // pred_check
      _
    $region19: #{tpu_custom_call.1} parent=1 // pred_check_branch
      %26 = sbr.rel (0) target = $region21
    $region20: #{tpu_custom_call.1} parent=1 // pred_region
      _
    $region21: #{tpu_custom_call.1} parent=1 // pred_fallthru
      _
    // Predicated region
    $region22: #{tpu_custom_call.1} parent=1 // pred_check
      _
    $region23: #{tpu_custom_call.1} parent=1 // pred_check_branch
      %28 = sbr.rel (0) target = $region25
    $region24: #{tpu_custom_call.1} parent=1 // pred_region
      _
    $region25: #{tpu_custom_call.1} parent=1 // pred_fallthru
      _
    // Predicated region
    $region26: #{tpu_custom_call.1} parent=1 // pred_check
      _
    $region27: #{tpu_custom_call.1} parent=1 // pred_check_branch
      %30 = sbr.rel (0) target = $region29
    $region28: #{tpu_custom_call.1} parent=1 // pred_region
      _
    $region29: #{tpu_custom_call.1} parent=1 // pred_fallthru
      _
    // Predicated region
    $region30: #{tpu_custom_call.1} parent=1 // pred_check
      _
    $region31: #{tpu_custom_call.1} parent=1 // pred_check_branch
      %32 = sbr.rel (0) target = $region33
    $region32: #{tpu_custom_call.1} parent=1 // pred_region
      _
    $region33: #{tpu_custom_call.1} parent=1 // pred_fallthru
      _
    // Predicated region
    $region34: #{tpu_custom_call.1} parent=1 // pred_check
      _
    $region35: #{tpu_custom_call.1} parent=1 // pred_check_branch
      %34 = sbr.rel (0) target = $region37
    $region36: #{tpu_custom_call.1} parent=1 // pred_region
      _
    $region37: #{tpu_custom_call.1} parent=1 // pred_fallthru
      _
    // Predicated region
    $region38: #{tpu_custom_call.1} parent=1 // pred_check
      _
    $region39: #{tpu_custom_call.1} parent=1 // pred_check_branch
      %36 = sbr.rel (0) target = $region41
    $region40: #{tpu_custom_call.1} parent=1 // pred_region
      _
    $region41: #{tpu_custom_call.1} parent=1 // pred_fallthru
      _
    // Predicated region
    $region42: #{tpu_custom_call.1} parent=1 // pred_check
      _
    $region43: #{tpu_custom_call.1} parent=1 // pred_check_branch
      %38 = sbr.rel (0) target = $region45
    $region44: #{tpu_custom_call.1} parent=1 // pred_region
      _
    $region45: #{tpu_custom_call.1} parent=1 // pred_fallthru
      _
    %v40 = vld [vmem:[%s0] sm:$0xff]
    %v41 = vld [vmem:[%s0 + $0x8] sm:$0xff]
    %v42 = vld [vmem:[%s0 + $0x10] sm:$0xff]
    %v43 = vld [vmem:[%s0 + $0x18] sm:$0xff]
    %v44 = vld [vmem:[%s10] sm:$0x7f]
    %v45 = vpack.c.bf16 %v41, %v40
    %v46 = vpack.c.bf16 %v43, %v42
    %v47 = vld [vmem:[%s5] sm:$0xff]
    %v48 = vld [vmem:[%s5 + $0x8] sm:$0xff]
    %v49 = vld [vmem:[%s5 + $0x10] sm:$0xff]
    %v50 = vld [vmem:[%s5 + $0x18] sm:$0xff]
    %v51 = vld [vmem:[%s5 + $0x20] sm:$0xff]
    %v52 = vld [vmem:[%s5 + $0x28] sm:$0xff]
    %v53 = vld [vmem:[%s5 + $0x30] sm:$0xff]
    %v54 = vld [vmem:[%s5 + $0x38] sm:$0xff]
    %v63 = vunpack.c.l.b16 %v47
    %v64 = vunpack.c.h.b16 %v47
    %v65 = vunpack.c.l.b16 %v48
    %v66 = vunpack.c.h.b16 %v48
    %v67 = vunpack.c.l.b16 %v49
    %v68 = vunpack.c.h.b16 %v49
    %v69 = vunpack.c.l.b16 %v50
    %v70 = vunpack.c.h.b16 %v50
    %v71 = vunpack.c.l.b16 %v51
    %v72 = vunpack.c.h.b16 %v51
    %v73 = vunpack.c.l.b16 %v52
    %v74 = vunpack.c.h.b16 %v52
    %v75 = vunpack.c.l.b16 %v53
    %v76 = vunpack.c.h.b16 %v53
    %v77 = vunpack.c.l.b16 %v54
    %v78 = vunpack.c.h.b16 %v54
    %v79 = vpack.c.b16 %v65, %v63
    %v80 = vpack.c.b16 %v66, %v64
    %v81 = vpack.c.b16 %v69, %v67
    %v82 = vpack.c.b16 %v70, %v68
    %v83 = vpack.c.b16 %v73, %v71
    %v84 = vpack.c.b16 %v74, %v72
    %v85 = vpack.c.b16 %v77, %v75
    %v86 = vpack.c.b16 %v78, %v76
    %vm95 = vcmask 523264
    %v97 = vsel %vm95, %v45, 0
    %v100 = vsel %vm95, %v46, 0
    %102 = vmatpush.bf16.msra.mxu0 0
    %103 = vmatpush.bf16.msra.mxu0 0
    %104 = vmatpush.bf16.msra.mxu0 0
    %105 = vmatpush.bf16.msra.mxu0 0
    %106 = vmatpush.bf16.msra.mxu0 %v85
    %107 = vmatpush.bf16.msra.mxu0 %v83
    %108 = vmatpush.bf16.msra.mxu0 %v81
    %109 = vmatpush.bf16.msra.mxu0 %v79
    %110 = vmatmul.bf16.gmra.mxu0 %v97
    %v111 = vpop.f32.mrf.mxu0
    %v112 = vadd.f32 0.0, %v111
    %v113 = vpop.f32.mrf.mxu0
    %v114 = vadd.f32 0.0, %v113
    %115 = vmatmul.bf16.gmra.mxu0 %v100
    %v116 = vpop.f32.mrf.mxu0
    %v117 = vadd.f32 0.0, %v116
    %v118 = vpop.f32.mrf.mxu0
    %v119 = vadd.f32 0.0, %v118
    %120 = vdwg.mxu0
    %121 = vmatpush.bf16.msra.mxu0 0
    %122 = vmatpush.bf16.msra.mxu0 0
    %123 = vmatpush.bf16.msra.mxu0 0
    %124 = vmatpush.bf16.msra.mxu0 0
    %125 = vmatpush.bf16.msra.mxu0 %v86
    %126 = vmatpush.bf16.msra.mxu0 %v84
    %127 = vmatpush.bf16.msra.mxu0 %v82
    %128 = vmatpush.bf16.msra.mxu0 %v80
    %129 = vmatmul.bf16.gmra.mxu0 %v97
    %v130 = vpop.f32.mrf.mxu0
    %v131 = vadd.f32 0.0, %v130
    %v132 = vpop.f32.mrf.mxu0
    %v133 = vadd.f32 0.0, %v132
    %134 = vmatmul.bf16.gmra.mxu0 %v100
    %v135 = vpop.f32.mrf.mxu0
    %v136 = vadd.f32 0.0, %v135
    %v137 = vpop.f32.mrf.mxu0
    %v138 = vadd.f32 0.0, %v137
    %139 = vdwg.mxu0
    %v140 = vld [vmem:[%s2] sm:$0xf]
    %v141 = vld [vmem:[%s2 + $0x4] sm:$0xf]
    %v142 = vld [vmem:[%s2 + $0x8] sm:$0xf]
    %v143 = vld [vmem:[%s2 + $0xc] sm:$0xf]
    %v144 = vld [vmem:[%s2 + $0x10] sm:$0xf]
    %v145 = vld [vmem:[%s2 + $0x14] sm:$0xf]
    %v146 = vld [vmem:[%s2 + $0x18] sm:$0xf]
    %v147 = vld [vmem:[%s2 + $0x1c] sm:$0xf]
    %v148 = vld [vmem:[%s2 + $0x20] sm:$0xf]
    %v149 = vld [vmem:[%s2 + $0x24] sm:$0xf]
    %v150 = vld [vmem:[%s2 + $0x28] sm:$0xf]
    %v151 = vld [vmem:[%s2 + $0x2c] sm:$0xf]
    %v152 = vld [vmem:[%s2 + $0x30] sm:$0xf]
    %v153 = vld [vmem:[%s2 + $0x34] sm:$0xf]
    %v154 = vld [vmem:[%s2 + $0x38] sm:$0xf]
    %v155 = vld [vmem:[%s2 + $0x3c] sm:$0xf]
    %v156 = vpack.c.bf16 %v114, %v112
    %v157 = vpack.c.bf16 %v119, %v117
    %v174 = vunpack.c.l.b16 %v140
    %v175 = vunpack.c.l.b16 %v141
    %v176 = vunpack.c.l.b16 %v142
    %v177 = vunpack.c.l.b16 %v143
    %v178 = vunpack.c.l.b16 %v144
    %v179 = vunpack.c.l.b16 %v145
    %v180 = vunpack.c.l.b16 %v146
    %v181 = vunpack.c.l.b16 %v147
    %v182 = vunpack.c.l.b16 %v148
    %v183 = vunpack.c.l.b16 %v149
    %v184 = vunpack.c.l.b16 %v150
    %v185 = vunpack.c.l.b16 %v151
    %v186 = vunpack.c.l.b16 %v152
    %v187 = vunpack.c.l.b16 %v153
    %v188 = vunpack.c.l.b16 %v154
    %v189 = vunpack.c.l.b16 %v155
    %v190 = vpack.c.b16 %v175, %v174
    %v191 = vpack.c.b16 %v177, %v176
    %v192 = vpack.c.b16 %v179, %v178
    %v193 = vpack.c.b16 %v181, %v180
    %v194 = vpack.c.b16 %v183, %v182
    %v195 = vpack.c.b16 %v185, %v184
    %v196 = vpack.c.b16 %v187, %v186
    %v197 = vpack.c.b16 %v189, %v188
    %vm198 = vcmask 261120
    %v200 = vsel %vm198, %v190, 0
    %v203 = vsel %vm198, %v191, 0
    %v206 = vsel %vm198, %v192, 0
    %v209 = vsel %vm198, %v193, 0
    %v212 = vsel %vm198, %v194, 0
    %v215 = vsel %vm198, %v195, 0
    %v218 = vsel %vm198, %v196, 0
    %v221 = vsel %vm198, %v197, 0
    %223 = vmatpush.bf16.msra.mxu0 0
    %224 = vmatpush.bf16.msra.mxu0 0
    %225 = vmatpush.bf16.msra.mxu0 0
    %226 = vmatpush.bf16.msra.mxu0 0
    %227 = vmatpush.bf16.msra.mxu0 0
    %228 = vmatpush.bf16.msra.mxu0 0
    %229 = vmatpush.bf16.msra.mxu0 %v157
    %230 = vmatpush.bf16.msra.mxu0 %v156
    %231 = vmatmul.bf16.gmra.mxu0 %v200
    %v232 = vpop.f32.mrf.mxu0
    %v233 = vadd.f32 0.0, %v232
    %v234 = vpop.f32.mrf.mxu0
    %v235 = vadd.f32 0.0, %v234
    %236 = vmatmul.bf16.gmra.mxu0 %v203
    %v237 = vpop.f32.mrf.mxu0
    %v238 = vadd.f32 0.0, %v237
    %v239 = vpop.f32.mrf.mxu0
    %v240 = vadd.f32 0.0, %v239
    %241 = vmatmul.bf16.gmra.mxu0 %v206
    %v242 = vpop.f32.mrf.mxu0
    %v243 = vadd.f32 0.0, %v242
    %v244 = vpop.f32.mrf.mxu0
    %v245 = vadd.f32 0.0, %v244
    %246 = vmatmul.bf16.gmra.mxu0 %v209
    %v247 = vpop.f32.mrf.mxu0
    %v248 = vadd.f32 0.0, %v247
    %v249 = vpop.f32.mrf.mxu0
    %v250 = vadd.f32 0.0, %v249
    %251 = vmatmul.bf16.gmra.mxu0 %v212
    %v252 = vpop.f32.mrf.mxu0
    %v253 = vadd.f32 0.0, %v252
    %v254 = vpop.f32.mrf.mxu0
    %v255 = vadd.f32 0.0, %v254
    %256 = vmatmul.bf16.gmra.mxu0 %v215
    %v257 = vpop.f32.mrf.mxu0
    %v258 = vadd.f32 0.0, %v257
    %v259 = vpop.f32.mrf.mxu0
    %v260 = vadd.f32 0.0, %v259
    %261 = vmatmul.bf16.gmra.mxu0 %v218
    %v262 = vpop.f32.mrf.mxu0
    %v263 = vadd.f32 0.0, %v262
    %v264 = vpop.f32.mrf.mxu0
    %v265 = vadd.f32 0.0, %v264
    %266 = vmatmul.bf16.gmra.mxu0 %v221
    %v267 = vpop.f32.mrf.mxu0
    %v268 = vadd.f32 0.0, %v267
    %v269 = vpop.f32.mrf.mxu0
    %v270 = vadd.f32 0.0, %v269
    %271 = vdwg.mxu0
    %v272 = vld [vmem:[%s3] sm:$0xf]
    %v273 = vld [vmem:[%s3 + $0x4] sm:$0xf]
    %v274 = vld [vmem:[%s3 + $0x8] sm:$0xf]
    %v275 = vld [vmem:[%s3 + $0xc] sm:$0xf]
    %v276 = vld [vmem:[%s3 + $0x10] sm:$0xf]
    %v277 = vld [vmem:[%s3 + $0x14] sm:$0xf]
    %v278 = vld [vmem:[%s3 + $0x18] sm:$0xf]
    %v279 = vld [vmem:[%s3 + $0x1c] sm:$0xf]
    %v280 = vld [vmem:[%s3 + $0x20] sm:$0xf]
    %v281 = vld [vmem:[%s3 + $0x24] sm:$0xf]
    %v282 = vld [vmem:[%s3 + $0x28] sm:$0xf]
    %v283 = vld [vmem:[%s3 + $0x2c] sm:$0xf]
    %v284 = vld [vmem:[%s3 + $0x30] sm:$0xf]
    %v285 = vld [vmem:[%s3 + $0x34] sm:$0xf]
    %v286 = vld [vmem:[%s3 + $0x38] sm:$0xf]
    %v287 = vld [vmem:[%s3 + $0x3c] sm:$0xf]
    %v288 = vpack.c.bf16 %v133, %v131
    %v289 = vpack.c.bf16 %v138, %v136
    %v306 = vunpack.c.l.b16 %v272
    %v307 = vunpack.c.l.b16 %v273
    %v308 = vunpack.c.l.b16 %v274
    %v309 = vunpack.c.l.b16 %v275
    %v310 = vunpack.c.l.b16 %v276
    %v311 = vunpack.c.l.b16 %v277
    %v312 = vunpack.c.l.b16 %v278
    %v313 = vunpack.c.l.b16 %v279
    %v314 = vunpack.c.l.b16 %v280
    %v315 = vunpack.c.l.b16 %v281
    %v316 = vunpack.c.l.b16 %v282
    %v317 = vunpack.c.l.b16 %v283
    %v318 = vunpack.c.l.b16 %v284
    %v319 = vunpack.c.l.b16 %v285
    %v320 = vunpack.c.l.b16 %v286
    %v321 = vunpack.c.l.b16 %v287
    %v322 = vpack.c.b16 %v307, %v306
    %v323 = vpack.c.b16 %v309, %v308
    %v324 = vpack.c.b16 %v311, %v310
    %v325 = vpack.c.b16 %v313, %v312
    %v326 = vpack.c.b16 %v315, %v314
    %v327 = vpack.c.b16 %v317, %v316
    %v328 = vpack.c.b16 %v319, %v318
    %v329 = vpack.c.b16 %v321, %v320
    %v331 = vsel %vm198, %v322, 0
    %v334 = vsel %vm198, %v323, 0
    %v337 = vsel %vm198, %v324, 0
    %v340 = vsel %vm198, %v325, 0
    %v343 = vsel %vm198, %v326, 0
    %v346 = vsel %vm198, %v327, 0
    %v349 = vsel %vm198, %v328, 0
    %v352 = vsel %vm198, %v329, 0
    %354 = vmatpush.bf16.msra.mxu0 0
    %355 = vmatpush.bf16.msra.mxu0 0
    %356 = vmatpush.bf16.msra.mxu0 0
    %357 = vmatpush.bf16.msra.mxu0 0
    %358 = vmatpush.bf16.msra.mxu0 0
    %359 = vmatpush.bf16.msra.mxu0 0
    %360 = vmatpush.bf16.msra.mxu0 %v289
    %361 = vmatpush.bf16.msra.mxu0 %v288
    %362 = vmatmul.bf16.gmra.mxu0 %v331
    %v363 = vpop.f32.mrf.mxu0
    %v364 = vadd.f32 0.0, %v363
    %v365 = vpop.f32.mrf.mxu0
    %v366 = vadd.f32 0.0, %v365
    %367 = vmatmul.bf16.gmra.mxu0 %v334
    %v368 = vpop.f32.mrf.mxu0
    %v369 = vadd.f32 0.0, %v368
    %v370 = vpop.f32.mrf.mxu0
    %v371 = vadd.f32 0.0, %v370
    %372 = vmatmul.bf16.gmra.mxu0 %v337
    %v373 = vpop.f32.mrf.mxu0
    %v374 = vadd.f32 0.0, %v373
    %v375 = vpop.f32.mrf.mxu0
    %v376 = vadd.f32 0.0, %v375
    %377 = vmatmul.bf16.gmra.mxu0 %v340
    %v378 = vpop.f32.mrf.mxu0
    %v379 = vadd.f32 0.0, %v378
    %v380 = vpop.f32.mrf.mxu0
    %v381 = vadd.f32 0.0, %v380
    %382 = vmatmul.bf16.gmra.mxu0 %v343
    %v383 = vpop.f32.mrf.mxu0
    %v384 = vadd.f32 0.0, %v383
    %v385 = vpop.f32.mrf.mxu0
    %v386 = vadd.f32 0.0, %v385
    %387 = vmatmul.bf16.gmra.mxu0 %v346
    %v388 = vpop.f32.mrf.mxu0
    %v389 = vadd.f32 0.0, %v388
    %v390 = vpop.f32.mrf.mxu0
    %v391 = vadd.f32 0.0, %v390
    %392 = vmatmul.bf16.gmra.mxu0 %v349
    %v393 = vpop.f32.mrf.mxu0
    %v394 = vadd.f32 0.0, %v393
    %v395 = vpop.f32.mrf.mxu0
    %v396 = vadd.f32 0.0, %v395
    %397 = vmatmul.bf16.gmra.mxu0 %v352
    %v398 = vpop.f32.mrf.mxu0
    %v399 = vadd.f32 0.0, %v398
    %v400 = vpop.f32.mrf.mxu0
    %v401 = vadd.f32 0.0, %v400
    %402 = vdwg.mxu0
    %v403 = vmul.f32 %v233, %v364
    %v404 = vmul.f32 %v235, %v366
    %v405 = vmul.f32 %v238, %v369
    %v406 = vmul.f32 %v240, %v371
    %v407 = vmul.f32 %v243, %v374
    %v408 = vmul.f32 %v245, %v376
    %v409 = vmul.f32 %v248, %v379
    %v410 = vmul.f32 %v250, %v381
    %v411 = vmul.f32 %v253, %v384
    %v412 = vmul.f32 %v255, %v386
    %v413 = vmul.f32 %v258, %v389
    %v414 = vmul.f32 %v260, %v391
    %v415 = vmul.f32 %v263, %v394
    %v416 = vmul.f32 %v265, %v396
    %v417 = vmul.f32 %v268, %v399
    %v418 = vmul.f32 %v270, %v401
    %v419 = vpack.c.bf16 %v404, %v403
    %v420 = vpack.c.bf16 %v406, %v405
    %v421 = vpack.c.bf16 %v408, %v407
    %v422 = vpack.c.bf16 %v410, %v409
    %v423 = vpack.c.bf16 %v412, %v411
    %v424 = vpack.c.bf16 %v414, %v413
    %v425 = vpack.c.bf16 %v416, %v415
    %v426 = vpack.c.bf16 %v418, %v417
    %v427 = vld [vmem:[%s6] sm:$0xf]
    %v428 = vld [vmem:[%s6 + $0x4] sm:$0xf]
    %v429 = vld [vmem:[%s6 + $0x8] sm:$0xf]
    %v430 = vld [vmem:[%s6 + $0xc] sm:$0xf]
    %v431 = vld [vmem:[%s6 + $0x10] sm:$0xf]
    %v432 = vld [vmem:[%s6 + $0x14] sm:$0xf]
    %v433 = vld [vmem:[%s6 + $0x18] sm:$0xf]
    %v434 = vld [vmem:[%s6 + $0x1c] sm:$0xf]
    %v443 = vunpack.c.l.b16 %v427
    %v444 = vunpack.c.l.b16 %v428
    %v445 = vunpack.c.l.b16 %v429
    %v446 = vunpack.c.l.b16 %v430
    %v447 = vunpack.c.l.b16 %v431
    %v448 = vunpack.c.l.b16 %v432
    %v449 = vunpack.c.l.b16 %v433
    %v450 = vunpack.c.l.b16 %v434
    %v451 = vpack.c.b16 %v444, %v443
    %v452 = vpack.c.b16 %v446, %v445
    %v453 = vpack.c.b16 %v448, %v447
    %v454 = vpack.c.b16 %v450, %v449
    %v460 = vsel %vm95, %v419, 0
    %v463 = vsel %vm95, %v420, 0
    %v466 = vsel %vm95, %v421, 0
    %v469 = vsel %vm95, %v422, 0
    %v472 = vsel %vm95, %v423, 0
    %v475 = vsel %vm95, %v424, 0
    %v478 = vsel %vm95, %v425, 0
    %v481 = vsel %vm95, %v426, 0
    %483 = vmatpush.bf16.msra.mxu0 0
    %484 = vmatpush.bf16.msra.mxu0 0
    %485 = vmatpush.bf16.msra.mxu0 0
    %486 = vmatpush.bf16.msra.mxu0 0
    %487 = vmatpush.bf16.msra.mxu0 %v454
    %488 = vmatpush.bf16.msra.mxu0 %v453
    %489 = vmatpush.bf16.msra.mxu0 %v452
    %490 = vmatpush.bf16.msra.mxu0 %v451
    %491 = vmatmul.bf16.gmra.mxu0 %v460
    %v492 = vpop.f32.mrf.mxu0
    %v493 = vadd.f32 0.0, %v492
    %v494 = vpop.f32.mrf.mxu0
    %v495 = vadd.f32 0.0, %v494
    %496 = vmatmul.bf16.gmra.mxu0 %v463
    %v497 = vpop.f32.mrf.mxu0
    %v498 = vadd.f32 0.0, %v497
    %v499 = vpop.f32.mrf.mxu0
    %v500 = vadd.f32 0.0, %v499
    %501 = vmatmul.bf16.gmra.mxu0 %v466
    %v502 = vpop.f32.mrf.mxu0
    %v503 = vadd.f32 0.0, %v502
    %v504 = vpop.f32.mrf.mxu0
    %v505 = vadd.f32 0.0, %v504
    %506 = vmatmul.bf16.gmra.mxu0 %v469
    %v507 = vpop.f32.mrf.mxu0
    %v508 = vadd.f32 0.0, %v507
    %v509 = vpop.f32.mrf.mxu0
    %v510 = vadd.f32 0.0, %v509
    %511 = vmatmul.bf16.gmra.mxu0 %v472
    %v512 = vpop.f32.mrf.mxu0
    %v513 = vadd.f32 0.0, %v512
    %v514 = vpop.f32.mrf.mxu0
    %v515 = vadd.f32 0.0, %v514
    %516 = vmatmul.bf16.gmra.mxu0 %v475
    %v517 = vpop.f32.mrf.mxu0
    %v518 = vadd.f32 0.0, %v517
    %v519 = vpop.f32.mrf.mxu0
    %v520 = vadd.f32 0.0, %v519
    %521 = vmatmul.bf16.gmra.mxu0 %v478
    %v522 = vpop.f32.mrf.mxu0
    %v523 = vadd.f32 0.0, %v522
    %v524 = vpop.f32.mrf.mxu0
    %v525 = vadd.f32 0.0, %v524
    %526 = vmatmul.bf16.gmra.mxu0 %v481
    %v527 = vpop.f32.mrf.mxu0
    %v528 = vadd.f32 0.0, %v527
    %v529 = vpop.f32.mrf.mxu0
    %v530 = vadd.f32 0.0, %v529
    %531 = vdwg.mxu0
    %v532 = vld [vmem:[%s1] sm:$0xff]
    %v533 = vld [vmem:[%s1 + $0x8] sm:$0xff]
    %v534 = vld [vmem:[%s1 + $0x10] sm:$0xff]
    %v535 = vld [vmem:[%s1 + $0x18] sm:$0xff]
    %v536 = vld [vmem:[%s1 + $0x20] sm:$0xff]
    %v537 = vld [vmem:[%s1 + $0x28] sm:$0xff]
    %v538 = vld [vmem:[%s1 + $0x30] sm:$0xff]
    %v539 = vld [vmem:[%s1 + $0x38] sm:$0xff]
    %v540 = vld [vmem:[%s1 + $0x40] sm:$0xff]
    %v541 = vld [vmem:[%s1 + $0x48] sm:$0xff]
    %v542 = vld [vmem:[%s1 + $0x50] sm:$0xff]
    %v543 = vld [vmem:[%s1 + $0x58] sm:$0xff]
    %v544 = vld [vmem:[%s1 + $0x60] sm:$0xff]
    %v545 = vld [vmem:[%s1 + $0x68] sm:$0xff]
    %v546 = vld [vmem:[%s1 + $0x70] sm:$0xff]
    %v547 = vld [vmem:[%s1 + $0x78] sm:$0xff]
    %549 = vset.pattern.permute.xlu0 0
    %550 = vperm.xlu0 %549, %v532
    %v551 = vpop.permute.xlu0 %550
    %554 = vset.pattern.permute.xlu0 0
    %555 = vperm.xlu0 %554, %v533
    %v556 = vpop.permute.xlu0 %555
    %559 = vset.pattern.permute.xlu0 0
    %560 = vperm.xlu0 %559, %v534
    %v561 = vpop.permute.xlu0 %560
    %564 = vset.pattern.permute.xlu0 0
    %565 = vperm.xlu0 %564, %v535
    %v566 = vpop.permute.xlu0 %565
    %569 = vset.pattern.permute.xlu0 0
    %570 = vperm.xlu0 %569, %v536
    %v571 = vpop.permute.xlu0 %570
    %574 = vset.pattern.permute.xlu0 0
    %575 = vperm.xlu0 %574, %v537
    %v576 = vpop.permute.xlu0 %575
    %579 = vset.pattern.permute.xlu0 0
    %580 = vperm.xlu0 %579, %v538
    %v581 = vpop.permute.xlu0 %580
    %584 = vset.pattern.permute.xlu0 0
    %585 = vperm.xlu0 %584, %v539
    %v586 = vpop.permute.xlu0 %585
    %589 = vset.pattern.permute.xlu0 0
    %590 = vperm.xlu0 %589, %v540
    %v591 = vpop.permute.xlu0 %590
    %594 = vset.pattern.permute.xlu0 0
    %595 = vperm.xlu0 %594, %v541
    %v596 = vpop.permute.xlu0 %595
    %599 = vset.pattern.permute.xlu0 0
    %600 = vperm.xlu0 %599, %v542
    %v601 = vpop.permute.xlu0 %600
    %604 = vset.pattern.permute.xlu0 0
    %605 = vperm.xlu0 %604, %v543
    %v606 = vpop.permute.xlu0 %605
    %609 = vset.pattern.permute.xlu0 0
    %610 = vperm.xlu0 %609, %v544
    %v611 = vpop.permute.xlu0 %610
    %614 = vset.pattern.permute.xlu0 0
    %615 = vperm.xlu0 %614, %v545
    %v616 = vpop.permute.xlu0 %615
    %619 = vset.pattern.permute.xlu0 0
    %620 = vperm.xlu0 %619, %v546
    %v621 = vpop.permute.xlu0 %620
    %624 = vset.pattern.permute.xlu0 0
    %625 = vperm.xlu0 %624, %v547
    %v626 = vpop.permute.xlu0 %625
    %v628 = vmul.f32 %v551, %v493
    %v629 = vmul.f32 %v556, %v495
    %v630 = vmul.f32 %v561, %v498
    %v631 = vmul.f32 %v566, %v500
    %v632 = vmul.f32 %v571, %v503
    %v633 = vmul.f32 %v576, %v505
    %v634 = vmul.f32 %v581, %v508
    %v635 = vmul.f32 %v586, %v510
    %v636 = vmul.f32 %v591, %v513
    %v637 = vmul.f32 %v596, %v515
    %v638 = vmul.f32 %v601, %v518
    %v639 = vmul.f32 %v606, %v520
    %v640 = vmul.f32 %v611, %v523
    %v641 = vmul.f32 %v616, %v525
    %v642 = vmul.f32 %v621, %v528
    %v643 = vmul.f32 %v626, %v530
    %v644 = vmax.f32 %v628, -5.0
    %v645 = vmax.f32 %v629, -5.0
    %v646 = vmax.f32 %v630, -5.0
    %v647 = vmax.f32 %v631, -5.0
    %v648 = vmax.f32 %v632, -5.0
    %v649 = vmax.f32 %v633, -5.0
    %v650 = vmax.f32 %v634, -5.0
    %v651 = vmax.f32 %v635, -5.0
    %v652 = vmax.f32 %v636, -5.0
    %v653 = vmax.f32 %v637, -5.0
    %v654 = vmax.f32 %v638, -5.0
    %v655 = vmax.f32 %v639, -5.0
    %v656 = vmax.f32 %v640, -5.0
    %v657 = vmax.f32 %v641, -5.0
    %v658 = vmax.f32 %v642, -5.0
    %v659 = vmax.f32 %v643, -5.0
    %v660 = vmin.f32 %v644, 5.0
    %v661 = vmin.f32 %v645, 5.0
    %v662 = vmin.f32 %v646, 5.0
    %v663 = vmin.f32 %v647, 5.0
    %v664 = vmin.f32 %v648, 5.0
    %v665 = vmin.f32 %v649, 5.0
    %v666 = vmin.f32 %v650, 5.0
    %v667 = vmin.f32 %v651, 5.0
    %v668 = vmin.f32 %v652, 5.0
    %v669 = vmin.f32 %v653, 5.0
    %v670 = vmin.f32 %v654, 5.0
    %v671 = vmin.f32 %v655, 5.0
    %v672 = vmin.f32 %v656, 5.0
    %v673 = vmin.f32 %v657, 5.0
    %v674 = vmin.f32 %v658, 5.0
    %v675 = vmin.f32 %v659, 5.0
    %v676 = vmul.f32 %v660, 1.442695
    %v677 = vpow.pop %v676
    %v678 = vmul.f32 %v661, 1.442695
    %v679 = vpow.pop %v678
    %v680 = vmul.f32 %v662, 1.442695
    %v681 = vpow.pop %v680
    %v682 = vmul.f32 %v663, 1.442695
    %v683 = vpow.pop %v682
    %v684 = vmul.f32 %v664, 1.442695
    %v685 = vpow.pop %v684
    %v686 = vmul.f32 %v665, 1.442695
    %v687 = vpow.pop %v686
    %v688 = vmul.f32 %v666, 1.442695
    %v689 = vpow.pop %v688
    %v690 = vmul.f32 %v667, 1.442695
    %v691 = vpow.pop %v690
    %v692 = vmul.f32 %v668, 1.442695
    %v693 = vpow.pop %v692
    %v694 = vmul.f32 %v669, 1.442695
    %v695 = vpow.pop %v694
    %v696 = vmul.f32 %v670, 1.442695
    %v697 = vpow.pop %v696
    %v698 = vmul.f32 %v671, 1.442695
    %v699 = vpow.pop %v698
    %v700 = vmul.f32 %v672, 1.442695
    %v701 = vpow.pop %v700
    %v702 = vmul.f32 %v673, 1.442695
    %v703 = vpow.pop %v702
    %v704 = vmul.f32 %v674, 1.442695
    %v705 = vpow.pop %v704
    %v706 = vmul.f32 %v675, 1.442695
    %v707 = vpow.pop %v706
    %724 = vrot.lane.b32.xlu0 %v677, 64
    %v725 = vpop.permute.xlu0 %724
    %726 = vrot.lane.b32.xlu0 %v679, 64
    %v727 = vpop.permute.xlu0 %726
    %728 = vrot.lane.b32.xlu0 %v681, 64
    %v729 = vpop.permute.xlu0 %728
    %730 = vrot.lane.b32.xlu0 %v683, 64
    %v731 = vpop.permute.xlu0 %730
    %732 = vrot.lane.b32.xlu0 %v685, 64
    %v733 = vpop.permute.xlu0 %732
    %734 = vrot.lane.b32.xlu0 %v687, 64
    %v735 = vpop.permute.xlu0 %734
    %736 = vrot.lane.b32.xlu0 %v689, 64
    %v737 = vpop.permute.xlu0 %736
    %738 = vrot.lane.b32.xlu0 %v691, 64
    %v739 = vpop.permute.xlu0 %738
    %740 = vrot.lane.b32.xlu0 %v693, 64
    %v741 = vpop.permute.xlu0 %740
    %742 = vrot.lane.b32.xlu0 %v695, 64
    %v743 = vpop.permute.xlu0 %742
    %744 = vrot.lane.b32.xlu0 %v697, 64
    %v745 = vpop.permute.xlu0 %744
    %746 = vrot.lane.b32.xlu0 %v699, 64
    %v747 = vpop.permute.xlu0 %746
    %748 = vrot.lane.b32.xlu0 %v701, 64
    %v749 = vpop.permute.xlu0 %748
    %750 = vrot.lane.b32.xlu0 %v703, 64
    %v751 = vpop.permute.xlu0 %750
    %752 = vrot.lane.b32.xlu0 %v705, 64
    %v753 = vpop.permute.xlu0 %752
    %754 = vrot.lane.b32.xlu0 %v707, 64
    %v755 = vpop.permute.xlu0 %754
    %v772 = vmul.f32 %v233, %v725
    %v773 = vmul.f32 %v235, %v727
    %v774 = vmul.f32 %v238, %v729
    %v775 = vmul.f32 %v240, %v731
    %v776 = vmul.f32 %v243, %v733
    %v777 = vmul.f32 %v245, %v735
    %v778 = vmul.f32 %v248, %v737
    %v779 = vmul.f32 %v250, %v739
    %v780 = vmul.f32 %v253, %v741
    %v781 = vmul.f32 %v255, %v743
    %v782 = vmul.f32 %v258, %v745
    %v783 = vmul.f32 %v260, %v747
    %v784 = vmul.f32 %v263, %v749
    %v785 = vmul.f32 %v265, %v751
    %v786 = vmul.f32 %v268, %v753
    %v787 = vmul.f32 %v270, %v755
    %804 = vrot.lane.b32.xlu0 %v772, 64
    %v805 = vpop.permute.xlu0 %804
    %806 = vrot.lane.b32.xlu0 %v773, 64
    %v807 = vpop.permute.xlu0 %806
    %808 = vrot.lane.b32.xlu0 %v774, 64
    %v809 = vpop.permute.xlu0 %808
    %810 = vrot.lane.b32.xlu0 %v775, 64
    %v811 = vpop.permute.xlu0 %810
    %812 = vrot.lane.b32.xlu0 %v776, 64
    %v813 = vpop.permute.xlu0 %812
    %814 = vrot.lane.b32.xlu0 %v777, 64
    %v815 = vpop.permute.xlu0 %814
    %816 = vrot.lane.b32.xlu0 %v778, 64
    %v817 = vpop.permute.xlu0 %816
    %818 = vrot.lane.b32.xlu0 %v779, 64
    %v819 = vpop.permute.xlu0 %818
    %820 = vrot.lane.b32.xlu0 %v780, 64
    %v821 = vpop.permute.xlu0 %820
    %822 = vrot.lane.b32.xlu0 %v781, 64
    %v823 = vpop.permute.xlu0 %822
    %824 = vrot.lane.b32.xlu0 %v782, 64
    %v825 = vpop.permute.xlu0 %824
    %826 = vrot.lane.b32.xlu0 %v783, 64
    %v827 = vpop.permute.xlu0 %826
    %828 = vrot.lane.b32.xlu0 %v784, 64
    %v829 = vpop.permute.xlu0 %828
    %830 = vrot.lane.b32.xlu0 %v785, 64
    %v831 = vpop.permute.xlu0 %830
    %832 = vrot.lane.b32.xlu0 %v786, 64
    %v833 = vpop.permute.xlu0 %832
    %834 = vrot.lane.b32.xlu0 %v787, 64
    %v835 = vpop.permute.xlu0 %834
    %v852 = vsel %vm95, %v805, %v725
    %v853 = vsel %vm95, %v807, %v727
    %v854 = vsel %vm95, %v809, %v729
    %v855 = vsel %vm95, %v811, %v731
    %v856 = vsel %vm95, %v813, %v733
    %v857 = vsel %vm95, %v815, %v735
    %v858 = vsel %vm95, %v817, %v737
    %v859 = vsel %vm95, %v819, %v739
    %v860 = vsel %vm95, %v821, %v741
    %v861 = vsel %vm95, %v823, %v743
    %v862 = vsel %vm95, %v825, %v745
    %v863 = vsel %vm95, %v827, %v747
    %v864 = vsel %vm95, %v829, %v749
    %v865 = vsel %vm95, %v831, %v751
    %v866 = vsel %vm95, %v833, %v753
    %v867 = vsel %vm95, %v835, %v755
    %v868 = vld [vmem:[%s4] sm:$0xf]
    %v869 = vld [vmem:[%s4 + $0x4] sm:$0xf]
    %v870 = vld [vmem:[%s4 + $0x8] sm:$0xf]
    %v871 = vld [vmem:[%s4 + $0xc] sm:$0xf]
    %v872 = vpack.c.bf16 %v853, %v852
    %v873 = vpack.c.bf16 %v855, %v854
    %v874 = vpack.c.bf16 %v857, %v856
    %v875 = vpack.c.bf16 %v859, %v858
    %v876 = vpack.c.bf16 %v861, %v860
    %v877 = vpack.c.bf16 %v863, %v862
    %v878 = vpack.c.bf16 %v865, %v864
    %v879 = vpack.c.bf16 %v867, %v866
    %v884 = vunpack.c.l.b16 %v868
    %v885 = vunpack.c.l.b16 %v869
    %v886 = vunpack.c.l.b16 %v870
    %v887 = vunpack.c.l.b16 %v871
    %v888 = vpack.c.b16 %v885, %v884
    %v889 = vpack.c.b16 %v887, %v886
    %892 = vmatpush.bf16.msra.mxu0 %v879
    %893 = vmatpush.bf16.msra.mxu0 %v878
    %894 = vmatpush.bf16.msra.mxu0 %v877
    %895 = vmatpush.bf16.msra.mxu0 %v876
    %896 = vmatpush.bf16.msra.mxu0 %v875
    %897 = vmatpush.bf16.msra.mxu0 %v874
    %898 = vmatpush.bf16.msra.mxu0 %v873
    %899 = vmatpush.bf16.msra.mxu0 %v872
    %900 = vmatmul.bf16.gmra.mxu0 %v888
    %v901 = vpop.f32.mrf.mxu0
    %v902 = vadd.f32 0.0, %v901
    %v903 = vpop.f32.mrf.mxu0
    %v904 = vadd.f32 0.0, %v903
    %905 = vmatmul.bf16.gmra.mxu0 %v889
    %v906 = vpop.f32.mrf.mxu0
    %v907 = vadd.f32 0.0, %v906
    %v908 = vpop.f32.mrf.mxu0
    %v909 = vadd.f32 0.0, %v908
    %910 = vdwg.mxu0
    %v911 = vadd.f32 %v902, 1e-06
    %v912 = vadd.f32 %v904, 1e-06
    %v913 = vadd.f32 %v907, 1e-06
    %v914 = vadd.f32 %v909, 1e-06
    %v915 = vrcp.pop %v911
    %v916 = vrcp.pop %v912
    %v917 = vrcp.pop %v913
    %v918 = vrcp.pop %v914
    %923 = vrot.lane.b32.xlu0 %v915, 64
    %v924 = vpop.permute.xlu0 %923
    %925 = vrot.lane.b32.xlu0 %v916, 64
    %v926 = vpop.permute.xlu0 %925
    %927 = vrot.lane.b32.xlu0 %v917, 64
    %v928 = vpop.permute.xlu0 %927
    %929 = vrot.lane.b32.xlu0 %v918, 64
    %v930 = vpop.permute.xlu0 %929
    %v935 = vmul.f32 %v902, %v924
    %v936 = vmul.f32 %v904, %v926
    %v937 = vmul.f32 %v907, %v928
    %v938 = vmul.f32 %v909, %v930
    %v939 = vpack.c.bf16 %v936, %v935
    %v940 = vpack.c.bf16 %v938, %v937
    %v941 = vld [vmem:[%s7] sm:$0xf]
    %v942 = vld [vmem:[%s7 + $0x4] sm:$0xf]
    %v943 = vld [vmem:[%s7 + $0x8] sm:$0xf]
    %v944 = vld [vmem:[%s7 + $0xc] sm:$0xf]
    %v945 = vld [vmem:[%s7 + $0x10] sm:$0xf]
    %v946 = vld [vmem:[%s7 + $0x14] sm:$0xf]
    %v947 = vld [vmem:[%s7 + $0x18] sm:$0xf]
    %v948 = vld [vmem:[%s7 + $0x1c] sm:$0xf]
    %v957 = vunpack.c.l.b16 %v941
    %v958 = vunpack.c.l.b16 %v942
    %v959 = vunpack.c.l.b16 %v943
    %v960 = vunpack.c.l.b16 %v944
    %v961 = vunpack.c.l.b16 %v945
    %v962 = vunpack.c.l.b16 %v946
    %v963 = vunpack.c.l.b16 %v947
    %v964 = vunpack.c.l.b16 %v948
    %v965 = vpack.c.b16 %v958, %v957
    %v966 = vpack.c.b16 %v960, %v959
    %v967 = vpack.c.b16 %v962, %v961
    %v968 = vpack.c.b16 %v964, %v963
    %v974 = vsel %vm95, %v939, 0
    %v977 = vsel %vm95, %v940, 0
    %979 = vmatpush.bf16.msra.mxu0 0
    %980 = vmatpush.bf16.msra.mxu0 0
    %981 = vmatpush.bf16.msra.mxu0 0
    %982 = vmatpush.bf16.msra.mxu0 0
    %983 = vmatpush.bf16.msra.mxu0 %v968
    %984 = vmatpush.bf16.msra.mxu0 %v967
    %985 = vmatpush.bf16.msra.mxu0 %v966
    %986 = vmatpush.bf16.msra.mxu0 %v965
    %987 = vmatmul.bf16.gmra.mxu0 %v974
    %v988 = vpop.f32.mrf.mxu0
    %v989 = vadd.f32 0.0, %v988
    %v990 = vpop.f32.mrf.mxu0
    %v991 = vadd.f32 0.0, %v990
    %992 = vmatmul.bf16.gmra.mxu0 %v977
    %v993 = vpop.f32.mrf.mxu0
    %v994 = vadd.f32 0.0, %v993
    %v995 = vpop.f32.mrf.mxu0
    %v996 = vadd.f32 0.0, %v995
    %997 = vdwg.mxu0
    %v998 = vadd.f32 %v40, %v989
    %v999 = vadd.f32 %v41, %v991
    %v1000 = vadd.f32 %v42, %v994
    %v1001 = vadd.f32 %v43, %v996
    %v1002 = vperm.slane %v44, 0
    %v1003 = vadd.f32 %v998, %v1002
    %v1004 = vadd.f32 %v999, %v1002
    %v1005 = vadd.f32 %v1000, %v1002
    %v1006 = vadd.f32 %v1001, %v1002
    %v1007 = vsel %vm95, %v1003, 0.0
    %v1008 = vsel %vm95, %v1004, 0.0
    %v1009 = vadd.f32 %v1007, %v1008
    %v1010 = vsel %vm95, %v1005, 0.0
    %v1011 = vadd.f32 %v1009, %v1010
    %v1012 = vsel %vm95, %v1006, 0.0
    %v1013 = vadd.f32 %v1011, %v1012
    %v1014 = vrot.slane %v1013, 4
    %v1015 = vadd.f32 %v1013, %v1014
    %v1016 = vrot.slane %v1015, 2
    %v1017 = vadd.f32 %v1015, %v1016
    %v1018 = vrot.slane %v1017, 1
    %v1019 = vadd.f32 %v1017, %v1018
    %v1020 = vrcp.pop 32.0
    %v1021 = vmul.f32 32.0, %v1020
    %v1022 = vsub.f32 1.0, %v1021
    %v1023 = vmul.f32 %v1020, %v1022
    %v1024 = vadd.f32 %v1020, %v1023
    %vm1025 = vweird.f32 %v1020
    %v1026 = vsel %vm1025, %v1020, %v1024
    %v1027 = vmul.f32 %v1019, %v1026
    %v1028 = vsub.f32 %v1003, %v1027
    %v1029 = vsub.f32 %v1004, %v1027
    %v1030 = vsub.f32 %v1005, %v1027
    %v1031 = vsub.f32 %v1006, %v1027
    %v1032 = vmul.f32 %v1028, %v1028
    %v1033 = vmul.f32 %v1029, %v1029
    %v1034 = vmul.f32 %v1030, %v1030
    %v1035 = vmul.f32 %v1031, %v1031
    %v1036 = vsel %vm95, %v1032, 0.0
    %v1037 = vsel %vm95, %v1033, 0.0
    %v1038 = vadd.f32 %v1036, %v1037
    %v1039 = vsel %vm95, %v1034, 0.0
    %v1040 = vadd.f32 %v1038, %v1039
    %v1041 = vsel %vm95, %v1035, 0.0
    %v1042 = vadd.f32 %v1040, %v1041
    %v1043 = vrot.slane %v1042, 4
    %v1044 = vadd.f32 %v1042, %v1043
    %v1045 = vrot.slane %v1044, 2
    %v1046 = vadd.f32 %v1044, %v1045
    %v1047 = vrot.slane %v1046, 1
    %v1048 = vadd.f32 %v1046, %v1047
    %v1049 = vmul.f32 %v1048, %v1026
    %v1050 = vadd.f32 %v1049, 1e-05
    %v1051 = vrsqrt.pop %v1050
    %v1052 = vmul.f32 %v1051, %v1050
    %v1053 = vmul.f32 %v1052, %v1051
    %v1054 = vmul.f32 0.5, %v1053
    %v1055 = vsub.f32 1.5, %v1054
    %v1056 = vmul.f32 %v1051, %v1055
    %vm1057 = vweird.f32 %v1050
    %vm1058 = vweird.f32 %v1051
    %vm1059 = vmor %vm1057, %vm1058
    %v1060 = vsel %vm1059, %v1051, %v1056
    %v1061 = vmul.f32 %v44, %v1060
    %v1062 = vperm.slane %v1061, 1
    %v1063 = vmul.f32 %v1028, %v1062
    %v1064 = vmul.f32 %v1029, %v1062
    %v1065 = vmul.f32 %v1030, %v1062
    %v1066 = vmul.f32 %v1031, %v1062
    %v1067 = vperm.slane %v44, 2
    %v1068 = vadd.f32 %v1063, %v1067
    %v1069 = vadd.f32 %v1064, %v1067
    %v1070 = vadd.f32 %v1065, %v1067
    %v1071 = vadd.f32 %v1066, %v1067
    %v1072 = vpack.c.bf16 %v1069, %v1068
    %v1073 = vpack.c.bf16 %v1071, %v1070
    %v1074 = vld [vmem:[%s8] sm:$0xf]
    %v1075 = vld [vmem:[%s8 + $0x4] sm:$0xf]
    %v1076 = vld [vmem:[%s8 + $0x8] sm:$0xf]
    %v1077 = vld [vmem:[%s8 + $0xc] sm:$0xf]
    %v1078 = vld [vmem:[%s8 + $0x10] sm:$0xf]
    %v1079 = vld [vmem:[%s8 + $0x14] sm:$0xf]
    %v1080 = vld [vmem:[%s8 + $0x18] sm:$0xf]
    %v1081 = vld [vmem:[%s8 + $0x1c] sm:$0xf]
    %v1082 = vperm.slane %v44, 3
    %v1091 = vunpack.c.l.b16 %v1074
    %v1092 = vunpack.c.l.b16 %v1075
    %v1093 = vunpack.c.l.b16 %v1076
    %v1094 = vunpack.c.l.b16 %v1077
    %v1095 = vunpack.c.l.b16 %v1078
    %v1096 = vunpack.c.l.b16 %v1079
    %v1097 = vunpack.c.l.b16 %v1080
    %v1098 = vunpack.c.l.b16 %v1081
    %v1099 = vpack.c.b16 %v1092, %v1091
    %v1100 = vpack.c.b16 %v1094, %v1093
    %v1101 = vpack.c.b16 %v1096, %v1095
    %v1102 = vpack.c.b16 %v1098, %v1097
    %v1108 = vsel %vm95, %v1072, 0
    %v1111 = vsel %vm95, %v1073, 0
    %1113 = vmatpush.bf16.msra.mxu0 0
    %1114 = vmatpush.bf16.msra.mxu0 0
    %1115 = vmatpush.bf16.msra.mxu0 0
    %1116 = vmatpush.bf16.msra.mxu0 0
    %1117 = vmatpush.bf16.msra.mxu0 %v1102
    %1118 = vmatpush.bf16.msra.mxu0 %v1101
    %1119 = vmatpush.bf16.msra.mxu0 %v1100
    %1120 = vmatpush.bf16.msra.mxu0 %v1099
    %1121 = vmatmul.bf16.gmra.mxu0 %v1108
    %v1122 = vpop.f32.mrf.mxu0
    %v1123 = vadd.f32 %v1082, %v1122
    %v1124 = vpop.f32.mrf.mxu0
    %v1125 = vadd.f32 %v1082, %v1124
    %1126 = vmatmul.bf16.gmra.mxu0 %v1111
    %v1127 = vpop.f32.mrf.mxu0
    %v1128 = vadd.f32 %v1082, %v1127
    %v1129 = vpop.f32.mrf.mxu0
    %v1130 = vadd.f32 %v1082, %v1129
    %1131 = vdwg.mxu0
    %v1132 = vmax.f32 %v1123, 0.0
    %v1133 = vmax.f32 %v1125, 0.0
    %v1134 = vmax.f32 %v1128, 0.0
    %v1135 = vmax.f32 %v1130, 0.0
    %v1136 = vpack.c.bf16 %v1133, %v1132
    %v1137 = vpack.c.bf16 %v1135, %v1134
    %v1138 = vld [vmem:[%s9] sm:$0xf]
    %v1139 = vld [vmem:[%s9 + $0x4] sm:$0xf]
    %v1140 = vld [vmem:[%s9 + $0x8] sm:$0xf]
    %v1141 = vld [vmem:[%s9 + $0xc] sm:$0xf]
    %v1142 = vld [vmem:[%s9 + $0x10] sm:$0xf]
    %v1143 = vld [vmem:[%s9 + $0x14] sm:$0xf]
    %v1144 = vld [vmem:[%s9 + $0x18] sm:$0xf]
    %v1145 = vld [vmem:[%s9 + $0x1c] sm:$0xf]
    %v1146 = vld [vmem:[%s9 + $0x20] sm:$0xf]
    %v1147 = vld [vmem:[%s9 + $0x24] sm:$0xf]
    %v1148 = vld [vmem:[%s9 + $0x28] sm:$0xf]
    %v1149 = vld [vmem:[%s9 + $0x2c] sm:$0xf]
    %v1150 = vld [vmem:[%s9 + $0x30] sm:$0xf]
    %v1151 = vld [vmem:[%s9 + $0x34] sm:$0xf]
    %v1152 = vld [vmem:[%s9 + $0x38] sm:$0xf]
    %v1153 = vld [vmem:[%s9 + $0x3c] sm:$0xf]
    %v1154 = vperm.slane %v44, 4
    %v1171 = vunpack.c.l.b16 %v1138
    %v1172 = vunpack.c.l.b16 %v1139
    %v1173 = vunpack.c.l.b16 %v1140
    %v1174 = vunpack.c.l.b16 %v1141
    %v1175 = vunpack.c.l.b16 %v1142
    %v1176 = vunpack.c.l.b16 %v1143
    %v1177 = vunpack.c.l.b16 %v1144
    %v1178 = vunpack.c.l.b16 %v1145
    %v1179 = vunpack.c.l.b16 %v1146
    %v1180 = vunpack.c.l.b16 %v1147
    %v1181 = vunpack.c.l.b16 %v1148
    %v1182 = vunpack.c.l.b16 %v1149
    %v1183 = vunpack.c.l.b16 %v1150
    %v1184 = vunpack.c.l.b16 %v1151
    %v1185 = vunpack.c.l.b16 %v1152
    %v1186 = vunpack.c.l.b16 %v1153
    %v1187 = vpack.c.b16 %v1172, %v1171
    %v1188 = vpack.c.b16 %v1174, %v1173
    %v1189 = vpack.c.b16 %v1176, %v1175
    %v1190 = vpack.c.b16 %v1178, %v1177
    %v1191 = vpack.c.b16 %v1180, %v1179
    %v1192 = vpack.c.b16 %v1182, %v1181
    %v1193 = vpack.c.b16 %v1184, %v1183
    %v1194 = vpack.c.b16 %v1186, %v1185
    %1203 = vmatpush.bf16.msra.mxu0 %v1194
    %1204 = vmatpush.bf16.msra.mxu0 %v1193
    %1205 = vmatpush.bf16.msra.mxu0 %v1192
    %1206 = vmatpush.bf16.msra.mxu0 %v1191
    %1207 = vmatpush.bf16.msra.mxu0 %v1190
    %1208 = vmatpush.bf16.msra.mxu0 %v1189
    %1209 = vmatpush.bf16.msra.mxu0 %v1188
    %1210 = vmatpush.bf16.msra.mxu0 %v1187
    %1211 = vmatmul.bf16.gmra.mxu0 %v1136
    %v1212 = vpop.f32.mrf.mxu0
    %v1213 = vadd.f32 %v1154, %v1212
    %v1214 = vpop.f32.mrf.mxu0
    %v1215 = vadd.f32 %v1154, %v1214
    %1216 = vmatmul.bf16.gmra.mxu0 %v1137
    %v1217 = vpop.f32.mrf.mxu0
    %v1218 = vadd.f32 %v1154, %v1217
    %v1219 = vpop.f32.mrf.mxu0
    %v1220 = vadd.f32 %v1154, %v1219
    %1221 = vdwg.mxu0
    %v1222 = vadd.f32 %v1068, %v1213
    %v1223 = vadd.f32 %v1069, %v1215
    %v1224 = vadd.f32 %v1070, %v1218
    %v1225 = vadd.f32 %v1071, %v1220
    %v1226 = vsel %vm95, %v1222, 0.0
    %v1227 = vsel %vm95, %v1223, 0.0
    %v1228 = vadd.f32 %v1226, %v1227
    %v1229 = vsel %vm95, %v1224, 0.0
    %v1230 = vadd.f32 %v1228, %v1229
    %v1231 = vsel %vm95, %v1225, 0.0
    %v1232 = vadd.f32 %v1230, %v1231
    %v1233 = vrot.slane %v1232, 4
    %v1234 = vadd.f32 %v1232, %v1233
    %v1235 = vrot.slane %v1234, 2
    %v1236 = vadd.f32 %v1234, %v1235
    %v1237 = vrot.slane %v1236, 1
    %v1238 = vadd.f32 %v1236, %v1237
    %v1239 = vmul.f32 %v1238, %v1026
    %v1240 = vsub.f32 %v1222, %v1239
    %v1241 = vsub.f32 %v1223, %v1239
    %v1242 = vsub.f32 %v1224, %v1239
    %v1243 = vsub.f32 %v1225, %v1239
    %v1244 = vmul.f32 %v1240, %v1240
    %v1245 = vmul.f32 %v1241, %v1241
    %v1246 = vmul.f32 %v1242, %v1242
    %v1247 = vmul.f32 %v1243, %v1243
    %v1248 = vsel %vm95, %v1244, 0.0
    %v1249 = vsel %vm95, %v1245, 0.0
    %v1250 = vadd.f32 %v1248, %v1249
    %v1251 = vsel %vm95, %v1246, 0.0
    %v1252 = vadd.f32 %v1250, %v1251
    %v1253 = vsel %vm95, %v1247, 0.0
    %v1254 = vadd.f32 %v1252, %v1253
    %v1255 = vrot.slane %v1254, 4
    %v1256 = vadd.f32 %v1254, %v1255
    %v1257 = vrot.slane %v1256, 2
    %v1258 = vadd.f32 %v1256, %v1257
    %v1259 = vrot.slane %v1258, 1
    %v1260 = vadd.f32 %v1258, %v1259
    %v1261 = vmul.f32 %v1260, %v1026
    %v1262 = vadd.f32 %v1261, 1e-05
    %v1263 = vrsqrt.pop %v1262
    %v1264 = vmul.f32 %v1263, %v1262
    %v1265 = vmul.f32 %v1264, %v1263
    %v1266 = vmul.f32 0.5, %v1265
    %v1267 = vsub.f32 1.5, %v1266
    %v1268 = vmul.f32 %v1263, %v1267
    %vm1269 = vweird.f32 %v1262
    %vm1270 = vweird.f32 %v1263
    %vm1271 = vmor %vm1269, %vm1270
    %v1272 = vsel %vm1271, %v1263, %v1268
    %v1273 = vmul.f32 %v44, %v1272
    %v1274 = vperm.slane %v1273, 5
    %v1275 = vmul.f32 %v1240, %v1274
    %v1276 = vmul.f32 %v1241, %v1274
    %v1277 = vmul.f32 %v1242, %v1274
    %v1278 = vmul.f32 %v1243, %v1274
    %v1279 = vperm.slane %v44, 6
    %v1280 = vadd.f32 %v1275, %v1279
    %v1281 = vadd.f32 %v1276, %v1279
    %v1282 = vadd.f32 %v1277, %v1279
    %v1283 = vadd.f32 %v1278, %v1279
    %1284 = vst.msk [vmem:[#allocation2] sm:$0xff] %vm95, %v1280
    %1285 = vst.msk [vmem:[#allocation2 + $0x8] sm:$0xff] %vm95, %v1281
    %1286 = vst.msk [vmem:[#allocation2 + $0x10] sm:$0xff] %vm95, %v1282
    %1287 = vst.msk [vmem:[#allocation2 + $0x18] sm:$0xff] %vm95, %v1283
    // Predicated region
    $region46: #{tpu_custom_call.1} parent=1 // pred_check
      _
    $region47: #{tpu_custom_call.1} parent=1 // pred_check_branch
      %1289 = sbr.rel (0) target = $region49
    $region48: #{tpu_custom_call.1} parent=1 // pred_region
      %1291 = vsyncadd [#allocation3], 0
      %s1292 = sshll.u32 [#allocation2], 4
      %s1293 = int_to_ptr.vmem [resolvable:$true] %s1292
      %s1294 = sshll.u32 %s11, 4
      %s1295 = int_to_ptr.hbm [resolvable:$true] %s1294
      %1300 = dma.vmem_to_hbm [thread:$0]  %s1293, 512, %s1295, [#allocation3], 128, 128, 8
    $region49: #{tpu_custom_call.1} parent=1 // pred_fallthru
      _
    // Predicated region
    $region50: #{tpu_custom_call.1} parent=1 // pred_check
      _
    $region51: #{tpu_custom_call.1} parent=1 // pred_check_branch
      %1302 = sbr.rel (0) target = $region53
    $region52: #{tpu_custom_call.1} parent=1 // pred_region
      %1304 = dma.done [#allocation3], 512
    $region53: #{tpu_custom_call.1} parent=1 // pred_fallthru
      _
    %1305 = vsyncpa [#allocation3], 1

</llo_original>
